<compile_context>
chip_gen: v5e
topology: v5e:2x2
jax: 0.10.0
libtpu: 0.0.40
codegen_flags: <defaults>
</compile_context>

<pallas_src>
import functools

import jax
import jax.numpy as jnp
from jax import lax
from jax.experimental import pallas as pl
from jax.experimental.pallas import tpu as pltpu


# ----------------------------- tiling helpers ------------------------------- #

def _pick_seq_tile(s, cap):
    """Largest tile <= cap that divides s and is a multiple of 8 (or full s)."""
    if s <= cap:
        return s
    start = cap - cap % 8
    for t in range(start, 7, -8):
        if s % t == 0:
            return t
    # TODO(synk): ragged sequence lengths fall back to a single full-S tile.
    return s


# ----------------------------- linear projection ---------------------------- #

def _linear_kernel(x_ref, w_ref, o_ref, *, compute_dtype):
    # y = x @ W^T  (PyTorch nn.Linear, bias=False, weight = (out, in)); the
    # transpose is expressed via dot_general contraction dims -> MXU consumes
    # W directly, no XLU transpose.
    x = x_ref[...].astype(compute_dtype)          # (tm, K)
    w = w_ref[...]                                # (N, K), already compute dtype
    o_ref[...] = lax.dot_general(
        x, w, (((1,), (1,)), ((), ())),
        preferred_element_type=jnp.float32).astype(o_ref.dtype)


def linear_nt(x2d, w, *, out_dtype, tm_cap=256):
    """x2d: (M, K); w: (N, K) in compute dtype -> (M, N) = x @ w.T."""
    M, K = x2d.shape
    N = w.shape[0]
    tm = M if M <= tm_cap else tm_cap
    kern = functools.partial(_linear_kernel, compute_dtype=w.dtype)
    return pl.pallas_call(
        kern,
        out_shape=jax.ShapeDtypeStruct((M, N), out_dtype),
        grid=(pl.cdiv(M, tm),),
        in_specs=[
            pl.BlockSpec((tm, K), lambda i: (i, 0)),
            pl.BlockSpec((N, K), lambda i: (0, 0)),   # weight resident in VMEM
        ],
        out_specs=pl.BlockSpec((tm, N), lambda i: (i, 0)),
        compiler_params=pltpu.CompilerParams(
            dimension_semantics=("parallel",)),
    )(x2d, w)


def _qkv_fused_kernel(x_ref, w_ref, o_ref, *, compute_dtype):
    x = x_ref[...].astype(compute_dtype)          # (tm, K)
    w = w_ref[0]                                  # (N, K)
    o_ref[0] = lax.dot_general(
        x, w, (((1,), (1,)), ((), ())),
        preferred_element_type=jnp.float32).astype(o_ref.dtype)


def qkv_fused(x2d, w_stack, *, out_dtype, tm_cap=256):
    """x2d: (M, K); w_stack: (3, N, K) -> (3, M, N), one matmul call for K/V/Q."""
    M, K = x2d.shape
    _, N, _ = w_stack.shape
    tm = M if M <= tm_cap else tm_cap
    kern = functools.partial(_qkv_fused_kernel, compute_dtype=w_stack.dtype)
    return pl.pallas_call(
        kern,
        out_shape=jax.ShapeDtypeStruct((3, M, N), out_dtype),
        grid=(3, pl.cdiv(M, tm)),                 # weight axis outer: 3 weight DMAs total
        in_specs=[
            pl.BlockSpec((tm, K), lambda j, i: (i, 0)),
            pl.BlockSpec((1, N, K), lambda j, i: (j, 0, 0)),
        ],
        out_specs=pl.BlockSpec((1, tm, N), lambda j, i: (j, i, 0)),
        compiler_params=pltpu.CompilerParams(
            dimension_semantics=("parallel", "parallel")),
    )(x2d, w_stack)


# --------------------------- flash attention core --------------------------- #

def _flash_attn_kernel(*refs, scale, n_head, has_mask):
    if has_mask:
        q_ref, k_ref, v_ref, msk_ref, o_ref, m_sc, l_sc, acc_sc = refs
    else:
        q_ref, k_ref, v_ref, o_ref, m_sc, l_sc, acc_sc = refs

    ki = pl.program_id(2)

    @pl.when(ki == 0)
    def _():
        m_sc[...] = jnp.full_like(m_sc, -jnp.inf)
        l_sc[...] = jnp.zeros_like(l_sc)
        acc_sc[...] = jnp.zeros_like(acc_sc)

    q = q_ref[0]                                   # (H, tq, D) compute dtype
    k = k_ref[0]                                   # (H, tk, D)
    v = v_ref[0]                                   # (H, tk, D)

    # scores = q @ k^T / sqrt(D)  (batched over heads, contraction on last dims)
    s = lax.dot_general(q, k, (((2,), (2,)), ((0,), (0,))),
                        preferred_element_type=jnp.float32) * scale   # (H,tq,tk)
    if has_mask:
        mval = msk_ref[0]                          # (Hm, tq, tk) int8, Hm in {1, H}
        # masked_fill(mask == 0, -128): matches the PyTorch module (not -inf).
        s = jnp.where(mval == 0, jnp.float32(-128.0), s)

    # online softmax (f32 math on the VPU/EUP)
    m_prev = m_sc[...]                             # (H, tq, 1)
    m_new = jnp.maximum(m_prev, jnp.max(s, axis=-1, keepdims=True))
    alpha = jnp.exp(m_prev - m_new)
    p = jnp.exp(s - m_new)                         # (H, tq, tk) f32
    l_sc[...] = alpha * l_sc[...] + jnp.sum(p, axis=-1, keepdims=True)
    acc_sc[...] = alpha * acc_sc[...] + lax.dot_general(
        p.astype(v.dtype), v, (((2,), (1,)), ((0,), (0,))),
        preferred_element_type=jnp.float32)        # (H, tq, D)
    m_sc[...] = m_new

    @pl.when(ki == pl.num_programs(2) - 1)
    def _():
        # Deferred 1/l normalization (EUP reciprocal), then scatter heads into
        # the (tq, H*D) lane-dense output layout == permute(0,2,1,3)+reshape.
        inv_l = pl.reciprocal(l_sc[...], approx=True)      # (H, tq, 1)
        out = acc_sc[...] * inv_l                          # (H, tq, D) f32
        d = out.shape[-1]
        for h in range(n_head):                            # static unroll
            o_ref[0, :, h * d:(h + 1) * d] = out[h].astype(o_ref.dtype)


def flash_attention(q4, k4, v4, mask4=None, *, tq_cap=128, tk_cap=128):
    """q4/k4/v4: (B, H, S, D); mask4: None or (Bm, Hm, S, S) int8.

    Returns (B, S, H*D): attention output already in permute(0,2,1,3)+reshape
    layout, ready for the output projection (no host-side transpose).
    """
    B, H, S, D = q4.shape
    scale = 1.0 / float(D) ** 0.5
    tq = _pick_seq_tile(S, tq_cap)
    tk = _pick_seq_tile(S, tk_cap)
    has_mask = mask4 is not None

    in_specs = [
        pl.BlockSpec((1, H, tq, D), lambda b, qi, ki: (b, 0, qi, 0)),
        pl.BlockSpec((1, H, tk, D), lambda b, qi, ki: (b, 0, ki, 0)),
        pl.BlockSpec((1, H, tk, D), lambda b, qi, ki: (b, 0, ki, 0)),
    ]
    args = [q4, k4, v4]
    if has_mask:
        Bm, Hm = mask4.shape[0], mask4.shape[1]

        def mask_map(b, qi, ki):                   # reuse one tile when possible
            return (b if Bm > 1 else 0, 0, qi, ki)

        in_specs.append(pl.BlockSpec((1, Hm, tq, tk), mask_map))
        args.append(mask4)

    kern = functools.partial(_flash_attn_kernel, scale=scale, n_head=H,
                             has_mask=has_mask)
    return pl.pallas_call(
        kern,
        out_shape=jax.ShapeDtypeStruct((B, S, H * D), q4.dtype),
        grid=(B, S // tq, S // tk),
        in_specs=in_specs,
        out_specs=pl.BlockSpec((1, tq, H * D), lambda b, qi, ki: (b, qi, 0)),
        scratch_shapes=[
            pltpu.VMEM((H, tq, 1), jnp.float32),   # running max m
            pltpu.VMEM((H, tq, 1), jnp.float32),   # running sum l
            pltpu.VMEM((H, tq, D), jnp.float32),   # accumulator
        ],
        compiler_params=pltpu.CompilerParams(
            dimension_semantics=("parallel", "parallel", "arbitrary")),
    )(*args)


# --------------------------------- Module ----------------------------------- #

class MultiHeadAttentionPallas:
    def __init__(self, n_embed, n_head, key, compute_dtype=jnp.bfloat16):
        assert n_embed % n_head == 0
        self.n_embed = n_embed
        self.n_head = n_head
        self.n_size_per_head = n_embed // n_head
        self.compute_dtype = compute_dtype

        bound = 1.0 / float(n_embed) ** 0.5
        kk, kv, kq, kp = jax.random.split(key, 4)
        init = lambda k: jax.random.uniform(
            k, (n_embed, n_embed), jnp.float32, -bound, bound)
        # f32 master weights (PyTorch nn.Linear layout: (out, in))
        self.wk = init(kk)
        self.wv = init(kv)
        self.wq = init(kq)
        self.wproj = init(kp)
        # pre-cast copies for the MXU (halves weight HBM/VMEM traffic)
        cd = compute_dtype
        self.wk_c = self.wk.astype(cd)
        self.wv_c = self.wv.astype(cd)
        self.wq_c = self.wq.astype(cd)
        self.wproj_c = self.wproj.astype(cd)
        self.w_kvq_stack_c = jnp.stack([self.wk_c, self.wv_c, self.wq_c])  # (3,E,E)

    def __call__(self, query, key, value, mask=None):
        B, S, E = query.shape
        H, D = self.n_head, self.n_size_per_head
        M = B * S
        cd = self.compute_dtype

        if (key is query) and (value is query):
            # self-attention: fused K/V/Q projection, single pallas_call
            kvq = qkv_fused(query.reshape(M, E), self.w_kvq_stack_c, out_dtype=cd)
            k2, v2, q2 = kvq[0], kvq[1], kvq[2]
        else:
            k2 = linear_nt(key.reshape(M, E), self.wk_c, out_dtype=cd)
            v2 = linear_nt(value.reshape(M, E), self.wv_c, out_dtype=cd)
            q2 = linear_nt(query.reshape(M, E), self.wq_c, out_dtype=cd)

        # NOTE: raw row-major reshape == PyTorch `.view(B, H, S, D)` semantics
        # (NOT split-heads + transpose) — intentional, matches the module.
        k4 = k2.reshape(B, H, S, D)
        v4 = v2.reshape(B, H, S, D)
        q4 = q2.reshape(B, H, S, D)

        mask4 = None
        if mask is not None:
            m = jnp.asarray(mask)
            m = m.reshape((1,) * (4 - m.ndim) + m.shape)       # pad to rank 4
            Bm, Hm = m.shape[0], m.shape[1]
            mask4 = (jnp.broadcast_to(m, (Bm, Hm, S, S)) != 0).astype(jnp.int8)

        out = flash_attention(q4, k4, v4, mask4)                # (B, S, E) in cd
        # TODO(synk): attention dropout (p=0.5) omitted (eval-mode identity).
        out = linear_nt(out.reshape(M, E), self.wproj_c, out_dtype=jnp.float32)
        return out.reshape(B, S, E)


# ----------------------------- Pure-JAX reference --------------------------- #

def _reference(mod, query, key, value, mask=None):
    B, S, E = query.shape
    H, D = mod.n_head, mod.n_size_per_head
    k = (key @ mod.wk.T).reshape(B, H, S, D)
    v = (value @ mod.wv.T).reshape(B, H, S, D)
    q = (query @ mod.wq.T).reshape(B, H, S, D)
    w = jnp.einsum("bhqd,bhkd->bhqk", q, k) / float(D) ** 0.5
    if mask is not None:
        m = jnp.asarray(mask)
        m = m.reshape((1,) * (4 - m.ndim) + m.shape)
        w = jnp.where(jnp.broadcast_to(m, w.shape) == 0, -128.0, w)
    w = jax.nn.softmax(w, axis=-1)
    out = jnp.einsum("bhqk,bhkd->bhqd", w, v)
    out = jnp.transpose(out, (0, 2, 1, 3)).reshape(B, S, E)
    return out @ mod.wproj.T


# ----------------------------------- Main ------------------------------------ #

if __name__ == "__main__":
    B, S, E, H = 2, 8, 32, 4

    root = jax.random.PRNGKey(0)
    k_mod, k_q, k_k, k_v = jax.random.split(root, 4)

    mod = MultiHeadAttentionPallas(n_embed=E, n_head=H, key=k_mod)

    query = jax.random.normal(k_q, (B, S, E), jnp.float32)
    key_in = jax.random.normal(k_k, (B, S, E), jnp.float32)
    value = jax.random.normal(k_v, (B, S, E), jnp.float32)

    # 1) cross-attention path (separate projections), no mask -> no mask DMA
    out = jax.block_until_ready(mod(query, key_in, value, mask=None))
    ref = jax.block_until_ready(_reference(mod, query, key_in, value, mask=None))
    assert out.shape == (B, S, E)
    err = float(jnp.max(jnp.abs(out - ref)))
    assert jnp.allclose(out, ref, atol=3e-2, rtol=3e-2), err

    # 2) self-attention path (fused QKV pallas_call) with a causal int8 mask
    causal = jnp.tril(jnp.ones((S, S), jnp.int32))
    out2 = jax.block_until_ready(mod(query, query, query, mask=causal))
    ref2 = jax.block_until_ready(_reference(mod, query, query, query, causal))
    err2 = float(jnp.max(jnp.abs(out2 - ref2)))
    assert jnp.allclose(out2, ref2, atol=3e-2, rtol=3e-2), err2

    print("KERNEL_OK")
</pallas_src>

<mosaic_0001>
module attributes {stable_mosaic.version = 11 : i64} {
  func.func @_linear_kernel(%arg0: i32, %arg1: memref<16x32xf32, #tpu.memory_space<vmem>>, %arg2: memref<32x32xbf16, #tpu.memory_space<vmem>>, %arg3: memref<16x32xbf16, #tpu.memory_space<vmem>>) attributes {dimension_semantics = [#tpu.dimension_semantics<parallel>], iteration_bounds = array<i64: 1>, scalar_prefetch = 0 : i64, scratch_operands = 0 : i64, tpu.core_type = #tpu.core_type<tc>, window_params = [{transform_indices = @transform_0, window_bounds = array<i64: 16, 32>}, {pipeline_mode = #tpu.pipeline_mode<synchronous>, transform_indices = @transform_1, window_bounds = array<i64: 32, 32>}, {transform_indices = @transform_2, window_bounds = array<i64: 16, 32>}]} {
    %c0 = arith.constant 0 : index
    %c0_0 = arith.constant 0 : index
    %0 = vector.load %arg1[%c0, %c0_0] : memref<16x32xf32, #tpu.memory_space<vmem>>, vector<16x32xf32>
    %1 = arith.truncf %0 : vector<16x32xf32> to vector<16x32xbf16>
    %c0_1 = arith.constant 0 : index
    %c0_2 = arith.constant 0 : index
    %2 = vector.load %arg2[%c0_1, %c0_2] : memref<32x32xbf16, #tpu.memory_space<vmem>>, vector<32x32xbf16>
    %cst = arith.constant dense<0.000000e+00> : vector<16x32xf32>
    %3 = tpu.matmul %1, %2, %cst {dimension_numbers = #tpu.dot_dimension_numbers<[1], [1], [0], [0], [0, 0, 1, 0], [], []>} : vector<16x32xbf16>, vector<32x32xbf16>, vector<16x32xf32> -> vector<16x32xf32>
    %4 = arith.truncf %3 : vector<16x32xf32> to vector<16x32xbf16>
    %c0_3 = arith.constant 0 : index
    %c0_4 = arith.constant 0 : index
    %5 = vector.load %arg3[%c0_3, %c0_4] : memref<16x32xbf16, #tpu.memory_space<vmem>>, vector<16x32xbf16>
    tpu.vector_store %arg3[%c0_3, %c0_4], %4 {strides = array<i32>} : memref<16x32xbf16, #tpu.memory_space<vmem>>, vector<16x32xbf16>,
    return
  }
  func.func @transform_0(%arg0: i32) -> (i32, i32) {
    %c0_i32 = arith.constant 0 : i32
    %c0_i32_0 = arith.constant 0 : i32
    return %arg0, %c0_i32 : i32, i32
  }
  func.func @transform_1(%arg0: i32) -> (i32, i32) {
    %c0_i32 = arith.constant 0 : i32
    %c0_i32_0 = arith.constant 0 : i32
    %c0_i32_1 = arith.constant 0 : i32
    return %c0_i32, %c0_i32_0 : i32, i32
  }
  func.func @transform_2(%arg0: i32) -> (i32, i32) {
    %c0_i32 = arith.constant 0 : i32
    %c0_i32_0 = arith.constant 0 : i32
    return %arg0, %c0_i32 : i32, i32
  }
}

</mosaic_0001>

<llo_original>
// kernel: tpu_custom_call.1
$region0: #{tpu_custom_call.1}
  #allocation0 [shape = 'u32[]', space=smem, size = 0x4, offset = 0x4, fixed_abs, tag = 'smem constant byte address 0x4 - core index']
  #allocation1 [shape = 'u32[72,128]{1,0:T(1,128)}', space=vmem, size = 0x9000, scoped, tag = 'internal scratch']
  %s0 = inlined_call_operand.hbm [shape: f32[16,32], index: 0, kind: input, shape index: {}]
  %s1 = inlined_call_operand.hbm [shape: bf16[32,32], index: 1, kind: input, shape index: {}]
  %s2 = inlined_call_operand.hbm [shape: bf16[16,32], index: 2, kind: output, shape index: {}]
  %s3 = sld [smem:[#allocation0]]
  $region26: #{tpu_custom_call.1} parent=0
    _
  %s5 = ssub.s32 1, %s3
  %s6 = scalar_select 0, %s5, %s3
  $region1: #{tpu_custom_call.1} parent=0
    #allocation2 [shape = 'u8[8192]{0}', space=vmem, size = 0x2000, scoped, tag = 'input window, operand 0, single buffered']
    #allocation3 [shape = 's32[1]{0}', space=sflag, size = 0x4, scoped, tag = 'scoped memory for tpu_custom_call.1']
    #allocation4 [shape = 's32[1]{0}', space=sflag, size = 0x4, scoped, tag = 'scoped memory for tpu_custom_call.1']
    #allocation5 [shape = 'u8[8192]{0}', space=vmem, size = 0x2000, scoped, tag = 'input window, operand 1, single buffered']
    #allocation6 [shape = 's32[1]{0}', space=sflag, size = 0x4, scoped, tag = 'scoped memory for tpu_custom_call.1']
    #allocation7 [shape = 'u8[4096]{0}', space=vmem, size = 0x1000, scoped, tag = 'output window, operand 0, single buffered']
    %7 = vsyncpa [#allocation3], 0
    %8 = vsyncpa [#allocation6], 0
    %9 = vsyncpa [#allocation4], 0
    // Predicated region
    $region2: #{tpu_custom_call.1} parent=1 // pred_check
      _
    $region3: #{tpu_custom_call.1} parent=1 // pred_check_branch
      %11 = sbr.rel (0) target = $region5
    $region4: #{tpu_custom_call.1} parent=1 // pred_region
      %13 = vsyncadd [#allocation3], 0
      %s14 = sshll.u32 %s0, 4
      %s15 = int_to_ptr.hbm [resolvable:$true] %s14
      %s16 = sshll.u32 [#allocation2], 4
      %s17 = int_to_ptr.vmem [resolvable:$true] %s16
      %22 = dma.hbm_to_vmem [thread:$0]  %s15, 256, %s17, [#allocation3], 128, 128, 8
    $region5: #{tpu_custom_call.1} parent=1 // pred_fallthru
      _
    // Predicated region
    $region6: #{tpu_custom_call.1} parent=1 // pred_check
      _
    $region7: #{tpu_custom_call.1} parent=1 // pred_check_branch
      %24 = sbr.rel (0) target = $region9
    $region8: #{tpu_custom_call.1} parent=1 // pred_region
      %26 = vsyncadd [#allocation6], 0
      %s27 = sshll.u32 %s1, 4
      %s28 = int_to_ptr.hbm [resolvable:$true] %s27
      %s29 = sshll.u32 [#allocation5], 4
      %s30 = int_to_ptr.vmem [resolvable:$true] %s29
      %35 = dma.hbm_to_vmem [thread:$0]  %s28, 256, %s30, [#allocation6], 64, 64, 4
    $region9: #{tpu_custom_call.1} parent=1 // pred_fallthru
      _
    // Predicated region
    $region10: #{tpu_custom_call.1} parent=1 // pred_check
      _
    $region11: #{tpu_custom_call.1} parent=1 // pred_check_branch
      %37 = sbr.rel (0) target = $region13
    $region12: #{tpu_custom_call.1} parent=1 // pred_region
      %39 = dma.done [#allocation3], 256
    $region13: #{tpu_custom_call.1} parent=1 // pred_fallthru
      _
    // Predicated region
    $region14: #{tpu_custom_call.1} parent=1 // pred_check
      _
    $region15: #{tpu_custom_call.1} parent=1 // pred_check_branch
      %41 = sbr.rel (0) target = $region17
    $region16: #{tpu_custom_call.1} parent=1 // pred_region
      %43 = dma.done [#allocation6], 256
    $region17: #{tpu_custom_call.1} parent=1 // pred_fallthru
      _
    %v45 = vld [vmem:[#allocation2] sm:$0xff]
    %v46 = vld [vmem:[#allocation2 + $0x8] sm:$0xff]
    %v47 = vpack.c.bf16 %v46, %v45
    %v48 = vld [vmem:[#allocation5] sm:$0xf]
    %v49 = vld [vmem:[#allocation5 + $0x4] sm:$0xf]
    %v50 = vld [vmem:[#allocation5 + $0x8] sm:$0xf]
    %v51 = vld [vmem:[#allocation5 + $0xc] sm:$0xf]
    %v56 = vunpack.c.l.b16 %v48
    %v57 = vunpack.c.l.b16 %v49
    %v58 = vunpack.c.l.b16 %v50
    %v59 = vunpack.c.l.b16 %v51
    %v60 = vpack.c.b16 %v57, %v56
    %v61 = vpack.c.b16 %v59, %v58
    %vm62 = vcmask 261120
    %v64 = vsel %vm62, %v47, 0
    %v67 = vsel %vm62, %v60, 0
    %v70 = vsel %vm62, %v61, 0
    %72 = vmatpush.bf16.xpose.msra.mxu0 0
    %73 = vmatpush.bf16.xpose.msra.mxu0 0
    %74 = vmatpush.bf16.xpose.msra.mxu0 0
    %75 = vmatpush.bf16.xpose.msra.mxu0 0
    %76 = vmatpush.bf16.xpose.msra.mxu0 0
    %77 = vmatpush.bf16.xpose.msra.mxu0 0
    %78 = vmatpush.bf16.xpose.msra.mxu0 %v70
    %79 = vmatpush.bf16.xpose.msra.mxu0 %v67
    %80 = vmatmul.bf16.gmra.mxu0 %v64
    %v81 = vpop.f32.mrf.mxu0
    %v82 = vadd.f32 0.0, %v81
    %v83 = vpop.f32.mrf.mxu0
    %v84 = vadd.f32 0.0, %v83
    %85 = vdwg.mxu0
    %v86 = vpack.c.bf16 %v82, %v82
    %v87 = vpack.c.bf16 %v84, %v84
    %vm88 = vcmask 257024
    %89 = vst.msk [vmem:[#allocation7] sm:$0xf] %vm88, %v86
    %90 = vst.msk [vmem:[#allocation7 + $0x4] sm:$0xf] %vm88, %v87
    // Predicated region
    $region18: #{tpu_custom_call.1} parent=1 // pred_check
      _
    $region19: #{tpu_custom_call.1} parent=1 // pred_check_branch
      %92 = sbr.rel (0) target = $region21
    $region20: #{tpu_custom_call.1} parent=1 // pred_region
      %94 = vsyncadd [#allocation4], 0
      %s95 = sshll.u32 [#allocation7], 4
      %s96 = int_to_ptr.vmem [resolvable:$true] %s95
      %s97 = sshll.u32 %s2, 4
      %s98 = int_to_ptr.hbm [resolvable:$true] %s97
      %103 = dma.vmem_to_hbm [thread:$0]  %s96, 128, %s98, [#allocation4], 64, 64, 4
    $region21: #{tpu_custom_call.1} parent=1 // pred_fallthru
      _
    // Predicated region
    $region22: #{tpu_custom_call.1} parent=1 // pred_check
      _
    $region23: #{tpu_custom_call.1} parent=1 // pred_check_branch
      %105 = sbr.rel (0) target = $region25
    $region24: #{tpu_custom_call.1} parent=1 // pred_region
      %107 = dma.done [#allocation4], 128
    $region25: #{tpu_custom_call.1} parent=1 // pred_fallthru
      _
    %108 = vsyncpa [#allocation3], 1
    %109 = vsyncpa [#allocation6], 1
    %110 = vsyncpa [#allocation4], 1

</llo_original>
